<compile_context>
chip_gen: v5e
topology: v5e:2x2
jax: 0.10.0
libtpu: 0.0.40
codegen_flags: <defaults>
</compile_context>

<pallas_src>
import functools

import jax
import jax.numpy as jnp
from jax.experimental import pallas as pl
from jax.experimental.pallas import tpu as pltpu


def _round_up(x, m):
    return (x + m - 1) // m * m


_VMEM_LIMIT = 32 * 1024 * 1024    # compiler scoped-VMEM limit (<= v7x physical)
_VMEM_BUDGET = 20 * 1024 * 1024   # our own budget when sizing blocks


def _pick_tile_m(M, row_bytes, fixed_bytes, tm_max):
    """Pick an M-tile size.

    Prefers exact divisors of M that are multiples of 8 (-> no pad / no slice
    copies around the kernel), that fit a double-buffered VMEM budget, and that
    give a grid with >= 2 steps (both v7x TensorCores busy).  Returns (tm, pad);
    pad > 0 only on the rare fallback path.
    """
    def fits(d):
        return 2 * (d * row_bytes + fixed_bytes) <= _VMEM_BUDGET

    cands = [d for d in range(8, min(tm_max, M) + 1, 8)
             if M % d == 0 and fits(d)]
    if cands:
        multi = [d for d in cands if M // d >= 2]
        return (max(multi) if multi else max(cands)), 0

    # Fallback (M < 8 or no suitable divisor): pad M and accept the copy.
    tm = 8
    while tm * 2 <= tm_max and fits(tm * 2):
        tm *= 2
    return tm, _round_up(M, tm) - M


# --------------------------------------------------------------------------- #
# Kernel 1: fused time/freq "Linear(1 -> H)" embeddings (optionally + cond).
#   h_t[m, :] = x_t[m] * w_t + b_t   (+ z[m, :] @ wz_t)
#   h_f[m, :] = x_f[m] * w_f + b_f   (+ z[m, :] @ wz_f)
# x_t / x_f arrive stacked as the two columns of a single [M, 2] operand so the
# lane-padded scalar stream is read from HBM once.  NOTE: output lane width is
# HIDDEN; if HIDDEN < 128 (as in the small self-test) the stores are masked —
# production HIDDEN >= 128 keeps them lane-dense.
# --------------------------------------------------------------------------- #
def _fused_embed_kernel(x2_ref, wt_ref, bt_ref, wf_ref, bf_ref, ot_ref, of_ref):
    x2 = x2_ref[...]                               # [tm, 2]  (col 0: x_t, col 1: x_f)
    ot_ref[...] = (x2[:, 0:1] * wt_ref[...] + bt_ref[...]).astype(ot_ref.dtype)
    of_ref[...] = (x2[:, 1:2] * wf_ref[...] + bf_ref[...]).astype(of_ref.dtype)


def _fused_embed_cond_kernel(x2_ref, wt_ref, bt_ref, wf_ref, bf_ref,
                             z_ref, wzt_ref, wzf_ref, ot_ref, of_ref):
    x2 = x2_ref[...]                               # [tm, 2]
    z = z_ref[...]                                 # [tm, Hc] — read once, used twice
    yt = (x2[:, 0:1] * wt_ref[...] + bt_ref[...]
          + jnp.dot(z, wzt_ref[...], preferred_element_type=jnp.float32))
    yf = (x2[:, 1:2] * wf_ref[...] + bf_ref[...]
          + jnp.dot(z, wzf_ref[...], preferred_element_type=jnp.float32))
    ot_ref[...] = yt.astype(ot_ref.dtype)
    of_ref[...] = yf.astype(of_ref.dtype)


def fused_time_freq_embed(x2, w_t, b_t, w_f, b_f, z=None, wz_t=None, wz_f=None,
                          out_dtype=jnp.float32, tm_max=512):
    """x2: [M, 2]; w_*/b_*: [1, H]; optional z: [M, Hc], wz_*: [Hc, H].

    Returns (h_t, h_f), each [M, H].  Biases are expected pre-fused (b + b_z)
    in the conditioned case.
    """
    M = x2.shape[0]
    H = w_t.shape[1]
    Hc = 0 if z is None else z.shape[1]

    # Per-row streamed VMEM bytes: x2 (2 lanes padded to 128), z, two outputs.
    row_bytes = 128 * 4 + Hc * 4 + 2 * H * 4
    fixed_bytes = 4 * 8 * H * 4 + 2 * Hc * H * 4   # (1,H) params + wz_t/wz_f
    tm, pad = _pick_tile_m(M, row_bytes, fixed_bytes, tm_max)
    if pad:  # rare fallback
        x2 = jnp.pad(x2, ((0, pad), (0, 0)))
        if z is not None:
            z = jnp.pad(z, ((0, pad), (0, 0)))
    Mp = M + pad

    def par_spec(r, c):
        return pl.BlockSpec((r, c), lambda i: (0, 0))

    row_spec = pl.BlockSpec((tm, 2), lambda i: (i, 0))
    out_spec = pl.BlockSpec((tm, H), lambda i: (i, 0))

    if z is None:
        kernel = _fused_embed_kernel
        in_specs = [row_spec,
                    par_spec(1, H), par_spec(1, H),
                    par_spec(1, H), par_spec(1, H)]
        args = (x2, w_t, b_t, w_f, b_f)
    else:
        kernel = _fused_embed_cond_kernel
        in_specs = [row_spec,
                    par_spec(1, H), par_spec(1, H),
                    par_spec(1, H), par_spec(1, H),
                    pl.BlockSpec((tm, Hc), lambda i: (i, 0)),
                    par_spec(Hc, H), par_spec(Hc, H)]
        args = (x2, w_t, b_t, w_f, b_f, z, wz_t, wz_f)

    h_t, h_f = pl.pallas_call(
        kernel,
        out_shape=(jax.ShapeDtypeStruct((Mp, H), out_dtype),
                   jax.ShapeDtypeStruct((Mp, H), out_dtype)),
        grid_spec=pltpu.PrefetchScalarGridSpec(
            num_scalar_prefetch=0,
            grid=(Mp // tm,),
            in_specs=in_specs,
            out_specs=[out_spec, out_spec],
        ),
        compiler_params=pltpu.CompilerParams(
            dimension_semantics=("parallel",),
            vmem_limit_bytes=_VMEM_LIMIT),
    )(*args)
    if pad:
        h_t, h_f = h_t[:M], h_f[:M]
    return h_t, h_f


# --------------------------------------------------------------------------- #
# Kernel 2: matmul + bias for the central stack, Linear(FREQ -> H).
#   out[m, :] = x[m, :] @ w + b
# --------------------------------------------------------------------------- #
def _matmul_bias_kernel(x_ref, w_ref, b_ref, o_ref):
    o_ref[...] = (jnp.dot(x_ref[...], w_ref[...],
                          preferred_element_type=jnp.float32)
                  + b_ref[...]).astype(o_ref.dtype)


def matmul_bias(x, w, b, out_dtype=jnp.float32, tm_max=512):
    """x: [M, K]; w: [K, H]; b: [1, H]."""
    M, K = x.shape
    H = w.shape[1]
    row_bytes = max(K, 128) * 4 + H * 4
    fixed_bytes = (K * H + 8 * H) * 4
    tm, pad = _pick_tile_m(M, row_bytes, fixed_bytes, tm_max)
    if pad:
        x = jnp.pad(x, ((0, pad), (0, 0)))
    Mp = M + pad

    out = pl.pallas_call(
        _matmul_bias_kernel,
        out_shape=jax.ShapeDtypeStruct((Mp, H), out_dtype),
        grid_spec=pltpu.PrefetchScalarGridSpec(
            num_scalar_prefetch=0,
            grid=(Mp // tm,),
            in_specs=[pl.BlockSpec((tm, K), lambda i: (i, 0)),
                      pl.BlockSpec((K, H), lambda i: (0, 0)),
                      pl.BlockSpec((1, H), lambda i: (0, 0))],
            out_specs=pl.BlockSpec((tm, H), lambda i: (i, 0)),
        ),
        compiler_params=pltpu.CompilerParams(
            dimension_semantics=("parallel",),
            vmem_limit_bytes=_VMEM_LIMIT),
    )(x, w, b)
    return out[:M] if pad else out


# --------------------------------------------------------------------------- #
# Parameters (PyTorch nn.Linear-style uniform init; weights stored transposed
# so that y = x @ w + b).
# --------------------------------------------------------------------------- #
def _uniform(key, shape, k):
    return jax.random.uniform(key, shape, jnp.float32, minval=-k, maxval=k)


def make_linear_params(key, in_f, out_f):
    k = 1.0 / float(in_f) ** 0.5
    k1, k2 = jax.random.split(key)
    w = _uniform(k1, (in_f, out_f), k)   # transposed vs. torch [out, in]
    b = _uniform(k2, (1, out_f), k)
    return (w, b)


def make_layer0_params(key, hidden, freq, has_central_stack,
                       is_conditioned=False, hidden_cond=None):
    keys = jax.random.split(key, 5)
    p = {
        "w_t_0": make_linear_params(keys[0], 1, hidden),     # ([1,H], [1,H])
        "w_f_0": make_linear_params(keys[1], 1, hidden),
    }
    if is_conditioned:
        p["w_t_z"] = make_linear_params(keys[2], hidden_cond, hidden)
        p["w_f_z"] = make_linear_params(keys[3], hidden_cond, hidden)
    if has_central_stack:
        p["w_c_0"] = make_linear_params(keys[4], freq, hidden)
    return p


# --------------------------------------------------------------------------- #
# Forward pass (mirrors DelayedStackLayer0.forward).
# --------------------------------------------------------------------------- #
@functools.partial(jax.jit,
                   static_argnames=("has_central_stack", "is_conditioned"))
def delayed_stack_layer0_forward(params, spectrogram, condition=None, *,
                                 has_central_stack=True, is_conditioned=False):
    B, FREQ, FRAMES = spectrogram.shape
    H = params["w_t_0"][0].shape[1]

    # F.pad(spec, [1, -1]): shift one step along time (zero at t = 0).
    x_t = jnp.pad(spectrogram, ((0, 0), (0, 0), (1, 0)))[:, :, :-1]
    # F.pad(spec, [0, 0, 1, -1]): shift one step along frequency (zero at f=0).
    x_f = jnp.pad(spectrogram, ((0, 0), (1, 0), (0, 0)))[:, :-1, :]

    M = B * FREQ * FRAMES
    # Single stacked scalar stream: column 0 = x_t, column 1 = x_f.
    x2 = jnp.stack([x_t.reshape(M), x_f.reshape(M)], axis=-1)

    w_t, b_t = params["w_t_0"]
    w_f, b_f = params["w_f_0"]

    if is_conditioned:
        wz_t, bz_t = params["w_t_z"]
        wz_f, bz_f = params["w_f_z"]
        z = condition.reshape(M, -1)
        h_t, h_f = fused_time_freq_embed(
            x2, w_t, b_t + bz_t, w_f, b_f + bz_f,     # pre-fused biases
            z=z, wz_t=wz_t, wz_f=wz_f)
    else:
        h_t, h_f = fused_time_freq_embed(x2, w_t, b_t, w_f, b_f)

    h_t_0 = h_t.reshape(B, FREQ, FRAMES, H)
    h_f_0 = h_f.reshape(B, FREQ, FRAMES, H)

    if has_central_stack:
        # x_c_pad = time-shifted spectrogram, transposed -> [B, FRAMES, FREQ].
        x_c = jnp.transpose(x_t, (0, 2, 1)).reshape(B * FRAMES, FREQ)
        h_c = matmul_bias(x_c, *params["w_c_0"])
        h_c_0 = h_c.reshape(B, 1, FRAMES, H)
        return h_t_0, h_f_0, h_c_0
    return h_t_0, h_f_0


# --------------------------------------------------------------------------- #
# Pure-JAX reference (for correctness check only).
# --------------------------------------------------------------------------- #
def _reference(params, spec, condition, has_central_stack, is_conditioned):
    hp = jax.lax.Precision.HIGHEST
    x_t = jnp.pad(spec, ((0, 0), (0, 0), (1, 0)))[:, :, :-1][..., None]
    x_f = jnp.pad(spec, ((0, 0), (1, 0), (0, 0)))[:, :-1, :][..., None]
    w_t, b_t = params["w_t_0"]
    w_f, b_f = params["w_f_0"]
    h_t = x_t * w_t[0] + b_t[0]
    h_f = x_f * w_f[0] + b_f[0]
    if is_conditioned:
        wz_t, bz_t = params["w_t_z"]
        wz_f, bz_f = params["w_f_z"]
        h_t = h_t + jnp.dot(condition, wz_t, precision=hp) + bz_t[0]
        h_f = h_f + jnp.dot(condition, wz_f, precision=hp) + bz_f[0]
    outs = (h_t, h_f)
    if has_central_stack:
        w_c, b_c = params["w_c_0"]
        x_c = jnp.transpose(x_t[..., 0], (0, 2, 1))
        h_c = (jnp.dot(x_c, w_c, precision=hp) + b_c[0])[:, None]
        outs = outs + (h_c,)
    return outs


# --------------------------------------------------------------------------- #
if __name__ == "__main__":
    B, FREQ, FRAMES, HIDDEN = 2, 8, 16, 32
    HIDDEN_COND = 16

    key = jax.random.PRNGKey(0)
    k_p, k_s, k_z = jax.random.split(key, 3)

    spec = jax.random.normal(k_s, (B, FREQ, FRAMES), jnp.float32)
    cond = jax.random.normal(k_z, (B, FREQ, FRAMES, HIDDEN_COND), jnp.float32)

    TOL = dict(atol=1e-4, rtol=1e-4)

    # ---- conditioned + central stack (exercises both kernels, fused path) ---
    params_c = make_layer0_params(k_p, HIDDEN, FREQ, True, True, HIDDEN_COND)
    h_t, h_f, h_c = delayed_stack_layer0_forward(
        params_c, spec, cond, has_central_stack=True, is_conditioned=True)
    jax.block_until_ready((h_t, h_f, h_c))

    r_t, r_f, r_c = _reference(params_c, spec, cond, True, True)
    assert h_t.shape == (B, FREQ, FRAMES, HIDDEN)
    assert h_f.shape == (B, FREQ, FRAMES, HIDDEN)
    assert h_c.shape == (B, 1, FRAMES, HIDDEN)
    assert jnp.allclose(h_t, r_t, **TOL)
    assert jnp.allclose(h_f, r_f, **TOL)
    assert jnp.allclose(h_c, r_c, **TOL)

    # ---- default (unconditioned) configuration ------------------------------
    params_u = make_layer0_params(k_p, HIDDEN, FREQ, True, False, None)
    h_t2, h_f2, h_c2 = delayed_stack_layer0_forward(
        params_u, spec, None, has_central_stack=True, is_conditioned=False)
    jax.block_until_ready((h_t2, h_f2, h_c2))

    r_t2, r_f2, r_c2 = _reference(params_u, spec, None, True, False)
    assert jnp.allclose(h_t2, r_t2, **TOL)
    assert jnp.allclose(h_f2, r_f2, **TOL)
    assert jnp.allclose(h_c2, r_c2, **TOL)

    assert jnp.all(jnp.isfinite(h_t)) and jnp.all(jnp.isfinite(h_f)) \
        and jnp.all(jnp.isfinite(h_c))
    print("KERNEL_OK")
</pallas_src>

<mosaic_0001>
module attributes {stable_mosaic.version = 11 : i64} {
  func.func @_matmul_bias_kernel(%arg0: i32, %arg1: memref<16x8xf32, #tpu.memory_space<vmem>>, %arg2: memref<8x32xf32, #tpu.memory_space<vmem>>, %arg3: memref<1x32xf32, #tpu.memory_space<vmem>>, %arg4: memref<16x32xf32, #tpu.memory_space<vmem>>) attributes {dimension_semantics = [#tpu.dimension_semantics<parallel>], iteration_bounds = array<i64: 2>, scalar_prefetch = 0 : i64, scratch_operands = 0 : i64, tpu.core_type = #tpu.core_type<tc>, window_params = [{transform_indices = @transform_0, window_bounds = array<i64: 16, 8>}, {pipeline_mode = #tpu.pipeline_mode<synchronous>, transform_indices = @transform_1, window_bounds = array<i64: 8, 32>}, {pipeline_mode = #tpu.pipeline_mode<synchronous>, transform_indices = @transform_2, window_bounds = array<i64: 1, 32>}, {transform_indices = @transform_3, window_bounds = array<i64: 16, 32>}]} {
    %c0 = arith.constant 0 : index
    %c0_0 = arith.constant 0 : index
    %0 = vector.load %arg1[%c0, %c0_0] : memref<16x8xf32, #tpu.memory_space<vmem>>, vector<16x8xf32>
    %c0_1 = arith.constant 0 : index
    %c0_2 = arith.constant 0 : index
    %1 = vector.load %arg2[%c0_1, %c0_2] : memref<8x32xf32, #tpu.memory_space<vmem>>, vector<8x32xf32>
    %cst = arith.constant dense<0.000000e+00> : vector<16x32xf32>
    %2 = tpu.matmul %0, %1, %cst {dimension_numbers = #tpu.dot_dimension_numbers<[1], [0], [0], [1], [0, 0, 1, 1], [], []>} : vector<16x8xf32>, vector<8x32xf32>, vector<16x32xf32> -> vector<16x32xf32>
    %c0_3 = arith.constant 0 : index
    %c0_4 = arith.constant 0 : index
    %3 = vector.load %arg3[%c0_3, %c0_4] : memref<1x32xf32, #tpu.memory_space<vmem>>, vector<1x32xf32>
    %4 = vector.broadcast %3 : vector<1x32xf32> to vector<16x32xf32>
    %5 = arith.addf %2, %4 : vector<16x32xf32>
    %c0_5 = arith.constant 0 : index
    %c0_6 = arith.constant 0 : index
    %6 = vector.load %arg4[%c0_5, %c0_6] : memref<16x32xf32, #tpu.memory_space<vmem>>, vector<16x32xf32>
    tpu.vector_store %arg4[%c0_5, %c0_6], %5 {strides = array<i32>} : memref<16x32xf32, #tpu.memory_space<vmem>>, vector<16x32xf32>,
    return
  }
  func.func @transform_0(%arg0: i32) -> (i32, i32) {
    %c0_i32 = arith.constant 0 : i32
    %c0_i32_0 = arith.constant 0 : i32
    return %arg0, %c0_i32 : i32, i32
  }
  func.func @transform_1(%arg0: i32) -> (i32, i32) {
    %c0_i32 = arith.constant 0 : i32
    %c0_i32_0 = arith.constant 0 : i32
    %c0_i32_1 = arith.constant 0 : i32
    return %c0_i32, %c0_i32_0 : i32, i32
  }
  func.func @transform_2(%arg0: i32) -> (i32, i32) {
    %c0_i32 = arith.constant 0 : i32
    %c0_i32_0 = arith.constant 0 : i32
    %c0_i32_1 = arith.constant 0 : i32
    return %c0_i32, %c0_i32_0 : i32, i32
  }
  func.func @transform_3(%arg0: i32) -> (i32, i32) {
    %c0_i32 = arith.constant 0 : i32
    %c0_i32_0 = arith.constant 0 : i32
    return %arg0, %c0_i32 : i32, i32
  }
}

module attributes {stable_mosaic.version = 11 : i64} {
  func.func @_fused_embed_cond_kernel(%arg0: i32, %arg1: memref<128x2xf32, #tpu.memory_space<vmem>>, %arg2: memref<1x32xf32, #tpu.memory_space<vmem>>, %arg3: memref<1x32xf32, #tpu.memory_space<vmem>>, %arg4: memref<1x32xf32, #tpu.memory_space<vmem>>, %arg5: memref<1x32xf32, #tpu.memory_space<vmem>>, %arg6: memref<128x16xf32, #tpu.memory_space<vmem>>, %arg7: memref<16x32xf32, #tpu.memory_space<vmem>>, %arg8: memref<16x32xf32, #tpu.memory_space<vmem>>, %arg9: memref<128x32xf32, #tpu.memory_space<vmem>>, %arg10: memref<128x32xf32, #tpu.memory_space<vmem>>) attributes {dimension_semantics = [#tpu.dimension_semantics<parallel>], iteration_bounds = array<i64: 2>, scalar_prefetch = 0 : i64, scratch_operands = 0 : i64, tpu.core_type = #tpu.core_type<tc>, window_params = [{transform_indices = @transform_0, window_bounds = array<i64: 128, 2>}, {pipeline_mode = #tpu.pipeline_mode<synchronous>, transform_indices = @transform_1, window_bounds = array<i64: 1, 32>}, {pipeline_mode = #tpu.pipeline_mode<synchronous>, transform_indices = @transform_2, window_bounds = array<i64: 1, 32>}, {pipeline_mode = #tpu.pipeline_mode<synchronous>, transform_indices = @transform_3, window_bounds = array<i64: 1, 32>}, {pipeline_mode = #tpu.pipeline_mode<synchronous>, transform_indices = @transform_4, window_bounds = array<i64: 1, 32>}, {transform_indices = @transform_5, window_bounds = array<i64: 128, 16>}, {pipeline_mode = #tpu.pipeline_mode<synchronous>, transform_indices = @transform_6, window_bounds = array<i64: 16, 32>}, {pipeline_mode = #tpu.pipeline_mode<synchronous>, transform_indices = @transform_7, window_bounds = array<i64: 16, 32>}, {transform_indices = @transform_8, window_bounds = array<i64: 128, 32>}, {transform_indices = @transform_9, window_bounds = array<i64: 128, 32>}]} {
    %c0 = arith.constant 0 : index
    %c0_0 = arith.constant 0 : index
    %0 = vector.load %arg1[%c0, %c0_0] : memref<128x2xf32, #tpu.memory_space<vmem>>, vector<128x2xf32>
    %c0_1 = arith.constant 0 : index
    %c0_2 = arith.constant 0 : index
    %1 = vector.load %arg6[%c0_1, %c0_2] : memref<128x16xf32, #tpu.memory_space<vmem>>, vector<128x16xf32>
    %2 = vector.extract_strided_slice %0 {offsets = [0, 0], sizes = [128, 1], strides = [1, 1]} : vector<128x2xf32> to vector<128x1xf32>
    %c0_3 = arith.constant 0 : index
    %c0_4 = arith.constant 0 : index
    %3 = vector.load %arg2[%c0_3, %c0_4] : memref<1x32xf32, #tpu.memory_space<vmem>>, vector<1x32xf32>
    %4 = vector.broadcast %2 : vector<128x1xf32> to vector<128x32xf32>
    %5 = vector.broadcast %3 : vector<1x32xf32> to vector<128x32xf32>
    %6 = arith.mulf %4, %5 : vector<128x32xf32>
    %c0_5 = arith.constant 0 : index
    %c0_6 = arith.constant 0 : index
    %7 = vector.load %arg3[%c0_5, %c0_6] : memref<1x32xf32, #tpu.memory_space<vmem>>, vector<1x32xf32>
    %8 = vector.broadcast %7 : vector<1x32xf32> to vector<128x32xf32>
    %9 = arith.addf %6, %8 : vector<128x32xf32>
    %c0_7 = arith.constant 0 : index
    %c0_8 = arith.constant 0 : index
    %10 = vector.load %arg7[%c0_7, %c0_8] : memref<16x32xf32, #tpu.memory_space<vmem>>, vector<16x32xf32>
    %cst = arith.constant dense<0.000000e+00> : vector<128x32xf32>
    %11 = tpu.matmul %1, %10, %cst {dimension_numbers = #tpu.dot_dimension_numbers<[1], [0], [0], [1], [0, 0, 1, 1], [], []>} : vector<128x16xf32>, vector<16x32xf32>, vector<128x32xf32> -> vector<128x32xf32>
    %12 = arith.addf %9, %11 : vector<128x32xf32>
    %13 = vector.extract_strided_slice %0 {offsets = [0, 1], sizes = [128, 1], strides = [1, 1]} : vector<128x2xf32> to vector<128x1xf32>
    %c0_9 = arith.constant 0 : index
    %c0_10 = arith.constant 0 : index
    %14 = vector.load %arg4[%c0_9, %c0_10] : memref<1x32xf32, #tpu.memory_space<vmem>>, vector<1x32xf32>
    %15 = vector.broadcast %13 : vector<128x1xf32> to vector<128x32xf32>
    %16 = vector.broadcast %14 : vector<1x32xf32> to vector<128x32xf32>
    %17 = arith.mulf %15, %16 : vector<128x32xf32>
    %c0_11 = arith.constant 0 : index
    %c0_12 = arith.constant 0 : index
    %18 = vector.load %arg5[%c0_11, %c0_12] : memref<1x32xf32, #tpu.memory_space<vmem>>, vector<1x32xf32>
    %19 = vector.broadcast %18 : vector<1x32xf32> to vector<128x32xf32>
    %20 = arith.addf %17, %19 : vector<128x32xf32>
    %c0_13 = arith.constant 0 : index
    %c0_14 = arith.constant 0 : index
    %21 = vector.load %arg8[%c0_13, %c0_14] : memref<16x32xf32, #tpu.memory_space<vmem>>, vector<16x32xf32>
    %cst_15 = arith.constant dense<0.000000e+00> : vector<128x32xf32>
    %22 = tpu.matmul %1, %21, %cst_15 {dimension_numbers = #tpu.dot_dimension_numbers<[1], [0], [0], [1], [0, 0, 1, 1], [], []>} : vector<128x16xf32>, vector<16x32xf32>, vector<128x32xf32> -> vector<128x32xf32>
    %23 = arith.addf %20, %22 : vector<128x32xf32>
    %c0_16 = arith.constant 0 : index
    %c0_17 = arith.constant 0 : index
    %24 = vector.load %arg9[%c0_16, %c0_17] : memref<128x32xf32, #tpu.memory_space<vmem>>, vector<128x32xf32>
    tpu.vector_store %arg9[%c0_16, %c0_17], %12 {strides = array<i32>} : memref<128x32xf32, #tpu.memory_space<vmem>>, vector<128x32xf32>,
    %c0_18 = arith.constant 0 : index
    %c0_19 = arith.constant 0 : index
    %25 = vector.load %arg10[%c0_18, %c0_19] : memref<128x32xf32, #tpu.memory_space<vmem>>, vector<128x32xf32>
    tpu.vector_store %arg10[%c0_18, %c0_19], %23 {strides = array<i32>} : memref<128x32xf32, #tpu.memory_space<vmem>>, vector<128x32xf32>,
    return
  }
  func.func @transform_0(%arg0: i32) -> (i32, i32) {
    %c0_i32 = arith.constant 0 : i32
    %c0_i32_0 = arith.constant 0 : i32
    return %arg0, %c0_i32 : i32, i32
  }
  func.func @transform_1(%arg0: i32) -> (i32, i32) {
    %c0_i32 = arith.constant 0 : i32
    %c0_i32_0 = arith.constant 0 : i32
    %c0_i32_1 = arith.constant 0 : i32
    return %c0_i32, %c0_i32_0 : i32, i32
  }
  func.func @transform_2(%arg0: i32) -> (i32, i32) {
    %c0_i32 = arith.constant 0 : i32
    %c0_i32_0 = arith.constant 0 : i32
    %c0_i32_1 = arith.constant 0 : i32
    return %c0_i32, %c0_i32_0 : i32, i32
  }
  func.func @transform_3(%arg0: i32) -> (i32, i32) {
    %c0_i32 = arith.constant 0 : i32
    %c0_i32_0 = arith.constant 0 : i32
    %c0_i32_1 = arith.constant 0 : i32
    return %c0_i32, %c0_i32_0 : i32, i32
  }
  func.func @transform_4(%arg0: i32) -> (i32, i32) {
    %c0_i32 = arith.constant 0 : i32
    %c0_i32_0 = arith.constant 0 : i32
    %c0_i32_1 = arith.constant 0 : i32
    return %c0_i32, %c0_i32_0 : i32, i32
  }
  func.func @transform_5(%arg0: i32) -> (i32, i32) {
    %c0_i32 = arith.constant 0 : i32
    %c0_i32_0 = arith.constant 0 : i32
    return %arg0, %c0_i32 : i32, i32
  }
  func.func @transform_6(%arg0: i32) -> (i32, i32) {
    %c0_i32 = arith.constant 0 : i32
    %c0_i32_0 = arith.constant 0 : i32
    %c0_i32_1 = arith.constant 0 : i32
    return %c0_i32, %c0_i32_0 : i32, i32
  }
  func.func @transform_7(%arg0: i32) -> (i32, i32) {
    %c0_i32 = arith.constant 0 : i32
    %c0_i32_0 = arith.constant 0 : i32
    %c0_i32_1 = arith.constant 0 : i32
    return %c0_i32, %c0_i32_0 : i32, i32
  }
  func.func @transform_8(%arg0: i32) -> (i32, i32) {
    %c0_i32 = arith.constant 0 : i32
    %c0_i32_0 = arith.constant 0 : i32
    return %arg0, %c0_i32 : i32, i32
  }
  func.func @transform_9(%arg0: i32) -> (i32, i32) {
    %c0_i32 = arith.constant 0 : i32
    %c0_i32_0 = arith.constant 0 : i32
    return %arg0, %c0_i32 : i32, i32
  }
}

</mosaic_0001>

<llo_original>
// kernel: delayed_stack_layer0_forward.3
$region0: #{delayed_stack_layer0_forward.3}
  #allocation0 [shape = 'u32[]', space=smem, size = 0x4, offset = 0x4, fixed_abs, tag = 'smem constant byte address 0x4 - core index']
  #allocation1 [shape = 'u32[72,128]{1,0:T(1,128)}', space=vmem, size = 0x9000, scoped, tag = 'internal scratch']
  %s0 = inlined_call_operand.vmem [shape: f32[32,8], index: 0, kind: input, shape index: {}]
  %s1 = inlined_call_operand.vmem [shape: f32[8,32], index: 1, kind: input, shape index: {}]
  %s2 = inlined_call_operand.vmem [shape: f32[1,32], index: 2, kind: input, shape index: {}]
  %s3 = inlined_call_operand.hbm [shape: f32[32,32], index: 3, kind: output, shape index: {}]
  %s4 = sld [smem:[#allocation0]]
  $region45: #{delayed_stack_layer0_forward.3} parent=0
    _
  %s6 = ssub.s32 1, %s4
  %s7 = scalar_select 0, %s6, %s4
  $region1: #{delayed_stack_layer0_forward.3} parent=0
    #allocation2 [shape = 'u8[16384]{0}', space=vmem, size = 0x4000, scoped, tag = 'output window, operand 0']
    #allocation3 [shape = 's32[2]{0}', space=sflag, size = 0x8, scoped, tag = 'scoped memory for delayed_stack_layer0_forward.3']
    %8 = vsyncpa [#allocation3], 0
    %s9 = scalar_lea.sflag [#allocation3], 1
    %10 = vsyncpa %s9, 0
    loop: start=0, step=1, limit=4
    $region2: #{delayed_stack_layer0_forward.3} parent=1 // loop_pre_header
      _
    $region3: #{delayed_stack_layer0_forward.3} parent=1 // loop_header
      %s12 = sphi 0, %s16
      %p13 = scmp.ge.s32.totalorder %s12, 4
      %s22 = sphi 0, %s24
      %s25 = sphi 0, %s22
      %s26 = sphi 0, %s25
      %s42 = sphi 0, %s26
      %s46 = sphi 0, %s46
      %s48 = sphi 0, %s46
      %s49 = sphi 0, %s48
      %s63 = sphi 0, %s49
      %s67 = sphi 0, %s67
      %s69 = sphi 0, %s67
      %s70 = sphi 0, %s69
      %s84 = sphi 0, %s70
      %s90 = sphi 0, %s92
      %s93 = sphi 0, %s90
      %s94 = sphi 0, %s93
      %s110 = sphi 0, %s94
    $region4: #{delayed_stack_layer0_forward.3} parent=1 // loop_header_branch
      %15 = sbr.rel (%p13) target = $region8
    $region5: #{delayed_stack_layer0_forward.3} parent=1 // loop_body
      %s17 = ssub.s32 %s12, 1
      %s18 = ssub.s32 %s12, 2
      %s19 = sadd.s32 %s12, 1
      %s20 = ssub.s32 %s12, %s19
      %p21 = scmp.eq.s32.totalorder %s20, 0
      %s23 = sadd.s32 %s22, 1
      %s24 = scalar_select %p21, %s22, %s23
      %p27 = pneg %p21
      %p28 = scmp.eq.s32.totalorder %s12, 1
      %p29 = por %p27, %p28
      %p30 = scmp.ne.s32.totalorder %s22, %s25
      %p31 = scmp.eq.s32.totalorder %s12, 0
      %p32 = por %p30, %p31
      %p33 = scmp.ne.s32.totalorder %s22, %s25
      %p34 = scmp.eq.s32.totalorder %s17, 1
      %p35 = por %p33, %p34
      %p36 = scmp.ne.s32.totalorder %s25, %s26
      %p37 = scmp.eq.s32.totalorder %s17, 0
      %p38 = por %p36, %p37
      %p39 = scmp.ne.s32.totalorder %s25, %s26
      %p40 = scmp.eq.s32.totalorder %s18, 1
      %p41 = por %p39, %p40
      %p43 = scmp.ne.s32.totalorder %s26, %s42
      %p44 = scmp.eq.s32.totalorder %s18, 0
      %p45 = por %p43, %p44
      %s47 = sadd.s32 %s46, 1
      %p50 = scmp.eq.s32.totalorder %s12, 1
      %p51 = scmp.ne.s32.totalorder %s46, %s48
      %p52 = scmp.eq.s32.totalorder %s12, 0
      %p53 = por %p51, %p52
      %p54 = scmp.ne.s32.totalorder %s46, %s48
      %p55 = scmp.eq.s32.totalorder %s17, 1
      %p56 = por %p54, %p55
      %p57 = scmp.ne.s32.totalorder %s48, %s49
      %p58 = scmp.eq.s32.totalorder %s17, 0
      %p59 = por %p57, %p58
      %p60 = scmp.ne.s32.totalorder %s48, %s49
      %p61 = scmp.eq.s32.totalorder %s18, 1
      %p62 = por %p60, %p61
      %p64 = scmp.ne.s32.totalorder %s49, %s63
      %p65 = scmp.eq.s32.totalorder %s18, 0
      %p66 = por %p64, %p65
      %s68 = sadd.s32 %s67, 1
      %p71 = scmp.eq.s32.totalorder %s12, 1
      %p72 = scmp.ne.s32.totalorder %s67, %s69
      %p73 = scmp.eq.s32.totalorder %s12, 0
      %p74 = por %p72, %p73
      %p75 = scmp.ne.s32.totalorder %s67, %s69
      %p76 = scmp.eq.s32.totalorder %s17, 1
      %p77 = por %p75, %p76
      %p78 = scmp.ne.s32.totalorder %s69, %s70
      %p79 = scmp.eq.s32.totalorder %s17, 0
      %p80 = por %p78, %p79
      %p81 = scmp.ne.s32.totalorder %s69, %s70
      %p82 = scmp.eq.s32.totalorder %s18, 1
      %p83 = por %p81, %p82
      %p85 = scmp.ne.s32.totalorder %s70, %s84
      %p86 = scmp.eq.s32.totalorder %s18, 0
      %p87 = por %p85, %p86
      %s88 = ssub.s32 %s12, %s19
      %p89 = scmp.eq.s32.totalorder %s88, 0
      %s91 = sadd.s32 %s90, 1
      %s92 = scalar_select %p89, %s90, %s91
      %p95 = pneg %p89
      %p96 = scmp.eq.s32.totalorder %s12, 1
      %p97 = por %p95, %p96
      %p98 = scmp.ne.s32.totalorder %s90, %s93
      %p99 = scmp.eq.s32.totalorder %s12, 0
      %p100 = por %p98, %p99
      %p101 = scmp.ne.s32.totalorder %s90, %s93
      %p102 = scmp.eq.s32.totalorder %s17, 1
      %p103 = por %p101, %p102
      %p104 = scmp.ne.s32.totalorder %s93, %s94
      %p105 = scmp.eq.s32.totalorder %s17, 0
      %p106 = por %p104, %p105
      %p107 = scmp.ne.s32.totalorder %s93, %s94
      %p108 = scmp.eq.s32.totalorder %s18, 1
      %p109 = por %p107, %p108
      %p111 = scmp.ne.s32.totalorder %s94, %s110
      %p112 = scmp.eq.s32.totalorder %s18, 0
      %p113 = por %p111, %p112
      %p114 = scmp.le.s32.totalorder 1, %s12
      %p115 = scmp.lt.s32.totalorder %s12, 3
      %p116 = pnand %p114, %p115
      %p117 = pneg %p116
      // Predicated region
      $region9: #{delayed_stack_layer0_forward.3} parent=5 // pred_check
        _
      $region10: #{delayed_stack_layer0_forward.3} parent=5 // pred_check_branch
        %119 = sbr.rel (%p116) target = $region12
      $region11: #{delayed_stack_layer0_forward.3} parent=5 // pred_region
        %s120 = ssub.s32 %s12, 1
        // Predicated region
        $region13: #{delayed_stack_layer0_forward.3} parent=11 // pred_check
          %p121 = pneg %p59
        $region14: #{delayed_stack_layer0_forward.3} parent=11 // pred_check_branch
          %123 = sbr.rel (%p121) target = $region16
        $region15: #{delayed_stack_layer0_forward.3} parent=11 // pred_region
          _
        $region16: #{delayed_stack_layer0_forward.3} parent=11 // pred_fallthru
          _
        // Predicated region
        $region17: #{delayed_stack_layer0_forward.3} parent=11 // pred_check
          %p124 = pneg %p80
        $region18: #{delayed_stack_layer0_forward.3} parent=11 // pred_check_branch
          %126 = sbr.rel (%p124) target = $region20
        $region19: #{delayed_stack_layer0_forward.3} parent=11 // pred_region
          _
        $region20: #{delayed_stack_layer0_forward.3} parent=11 // pred_fallthru
          _
      $region12: #{delayed_stack_layer0_forward.3} parent=5 // pred_fallthru
        _
      %p127 = scmp.lt.s32.totalorder %s12, 2
      // Predicated region
      $region21: #{delayed_stack_layer0_forward.3} parent=5 // pred_check
        %p128 = pneg %p127
      $region22: #{delayed_stack_layer0_forward.3} parent=5 // pred_check_branch
        %130 = sbr.rel (%p128) target = $region24
      $region23: #{delayed_stack_layer0_forward.3} parent=5 // pred_region
        // Predicated region
        $region25: #{delayed_stack_layer0_forward.3} parent=23 // pred_check
          %p131 = pneg %p32
        $region26: #{delayed_stack_layer0_forward.3} parent=23 // pred_check_branch
          %133 = sbr.rel (%p131) target = $region28
        $region27: #{delayed_stack_layer0_forward.3} parent=23 // pred_region
          %s134 = smul.u32 2, %s12
          %p135 = scmp.lt.s32.totalorder %s134, 3
          %s136 = scalar_select %p135, %s134, 3
          %s137 = smul.addr %s136, 8
          %s138 = scalar_lea.vmem %s0, %s137
          %s139 = smul.u32 2, %s12
        $region28: #{delayed_stack_layer0_forward.3} parent=23 // pred_fallthru
          _
      $region24: #{delayed_stack_layer0_forward.3} parent=5 // pred_fallthru
        _
      %p140 = scmp.le.s32.totalorder 1, %s12
      %p141 = scmp.lt.s32.totalorder %s12, 3
      %p142 = pnand %p140, %p141
      %p143 = pneg %p142
      // Predicated region
      $region29: #{delayed_stack_layer0_forward.3} parent=5 // pred_check
        _
      $region30: #{delayed_stack_layer0_forward.3} parent=5 // pred_check_branch
        %145 = sbr.rel (%p142) target = $region32
      $region31: #{delayed_stack_layer0_forward.3} parent=5 // pred_region
        %s146 = ssub.s32 %s12, 1
        %s147 = smul.u32 2, %s17
        %p148 = scmp.lt.s32.totalorder %s147, 3
        %s149 = scalar_select %p148, %s147, 3
        %s150 = smul.addr %s149, 8
        %s151 = scalar_lea.vmem %s0, %s150
        %p152 = pneg %p38
        %p153 = pneg %p35
        %p154 = pneg %p59
        %p155 = pneg %p56
        %p156 = pneg %p80
        %p157 = pneg %p77
        %p158 = pneg %p106
        %p159 = pneg %p103
        %s160 = sand.u32 %s93, 1
        %s161 = scalar_lea.sflag [#allocation3], %s160
        %s162 = sand.u32 %s93, 1
        %s163 = smul.addr %s162, 16
        %s164 = scalar_lea.vmem [#allocation2], %s163
        %s165 = smul.u32 2, %s17
        %p166 = scmp.lt.s32.totalorder %s165, 3
        %s167 = scalar_select %p166, %s165, 3
        %s168 = smul.addr %s167, 8
        %s169 = scalar_lea.vmem %s0, %s168
        %s170 = smul.u32 2, %s17
        %s171 = smul.u32 2, %s17
        %v172 = vld [vmem:[%s169] sm:$0xff]
        %v173 = vld [vmem:[%s169 + $0x8] sm:$0xff]
        %v174 = vld [vmem:[%s1] sm:$0xff]
        %v175 = vld [vmem:[%s2] sm:$0x1]
        %v177 = vperm.slane %v175, 0
        %vm179 = vcmask 64512
        %v181 = vsel %vm179, %v172, 0
        %v184 = vsel %vm179, %v173, 0
        %186 = vmatpush.msra.mxu0 0.0
        %187 = vmatpush.msra.mxu0 0.0
        %188 = vmatpush.msra.mxu0 0.0
        %189 = vmatpush.msra.mxu0 0.0
        %190 = vmatpush.msra.mxu0 0.0
        %191 = vmatpush.msra.mxu0 0.0
        %192 = vmatpush.msra.mxu0 0.0
        %193 = vmatpush.msra.mxu0 0.0
        %194 = vmatpush.msra.mxu0 0.0
        %195 = vmatpush.msra.mxu0 0.0
        %196 = vmatpush.msra.mxu0 0.0
        %197 = vmatpush.msra.mxu0 0.0
        %198 = vmatpush.msra.mxu0 0.0
        %199 = vmatpush.msra.mxu0 0.0
        %200 = vmatpush.msra.mxu0 0.0
        %201 = vmatpush.msra.mxu0 %v174
        %202 = vmatmul.f32.gmra.mxu0 %v181
        %v203 = vpop.f32.mrf.mxu0
        %v204 = vadd.f32 %v177, %v203
        %205 = vmatmul.f32.gmra.mxu0 %v184
        %v206 = vpop.f32.mrf.mxu0
        %v207 = vadd.f32 %v177, %v206
        %208 = vdwg.mxu0
        %vm209 = vcmask 261120
        %210 = vst.msk [vmem:[%s164] sm:$0xff] %vm209, %v204
        %211 = vst.msk [vmem:[%s164 + $0x8] sm:$0xff] %vm209, %v207
        %s212 = sand.u32 %s93, 1
        %s213 = scalar_lea.sflag [#allocation3], %s212
        %s214 = sand.u32 %s93, 1
        %s215 = smul.addr %s214, 16
        %s216 = scalar_lea.vmem [#allocation2], %s215
        // Predicated region
        $region33: #{delayed_stack_layer0_forward.3} parent=31 // pred_check
          %p217 = pneg %p103
        $region34: #{delayed_stack_layer0_forward.3} parent=31 // pred_check_branch
          %219 = sbr.rel (%p217) target = $region36
        $region35: #{delayed_stack_layer0_forward.3} parent=31 // pred_region
          %s220 = smul.u32 2, %s17
          %222 = vsyncadd %s213, 0
          %s223 = smul.addr %s220, 8
          %s224 = scalar_lea.hbm %s3, %s223
          %s225 = sshll.u32 %s216, 4
          %s226 = int_to_ptr.vmem [resolvable:$true] %s225
          %s227 = sshll.u32 %s224, 4
          %s228 = int_to_ptr.hbm [resolvable:$true] %s227
          %233 = dma.vmem_to_hbm [thread:$0]  %s226, 256, %s228, %s213, 128, 128, 8
        $region36: #{delayed_stack_layer0_forward.3} parent=31 // pred_fallthru
          _
      $region32: #{delayed_stack_layer0_forward.3} parent=5 // pred_fallthru
        _
      %p234 = scmp.le.s32.totalorder 2, %s12
      // Predicated region
      $region37: #{delayed_stack_layer0_forward.3} parent=5 // pred_check
        %p235 = pneg %p234
      $region38: #{delayed_stack_layer0_forward.3} parent=5 // pred_check_branch
        %237 = sbr.rel (%p235) target = $region40
      $region39: #{delayed_stack_layer0_forward.3} parent=5 // pred_region
        %s238 = ssub.s32 %s12, 2
        // Predicated region
        $region41: #{delayed_stack_layer0_forward.3} parent=39 // pred_check
          %p239 = pneg %p109
        $region42: #{delayed_stack_layer0_forward.3} parent=39 // pred_check_branch
          %241 = sbr.rel (%p239) target = $region44
        $region43: #{delayed_stack_layer0_forward.3} parent=39 // pred_region
          %s242 = sand.u32 %s94, 1
          %s243 = scalar_lea.sflag [#allocation3], %s242
          %s244 = sand.u32 %s94, 1
          %s245 = smul.addr %s244, 16
          %s246 = scalar_lea.vmem [#allocation2], %s245
          %248 = dma.done %s243, 256
        $region44: #{delayed_stack_layer0_forward.3} parent=39 // pred_fallthru
          _
      $region40: #{delayed_stack_layer0_forward.3} parent=5 // pred_fallthru
        _
    $region6: #{delayed_stack_layer0_forward.3} parent=1 // loop_footer
      %s16 = sadd.s32 1, %s12
    $region7: #{delayed_stack_layer0_forward.3} parent=1 // loop_footer_branch
      %11 = sbr.rel target = $region3
    $region8: #{delayed_stack_layer0_forward.3} parent=1 // loop_exit
      _
    %249 = vsyncpa [#allocation3], 1
    %s250 = scalar_lea.sflag [#allocation3], 1
    %251 = vsyncpa %s250, 1

// kernel: delayed_stack_layer0_forward.2
$region0: #{delayed_stack_layer0_forward.2}
  #allocation0 [shape = 'u32[]', space=smem, size = 0x4, offset = 0x4, fixed_abs, tag = 'smem constant byte address 0x4 - core index']
  #allocation1 [shape = 'u32[72,128]{1,0:T(1,128)}', space=vmem, size = 0x9000, scoped, tag = 'internal scratch']
  %s0 = inlined_call_operand.vmem [shape: f32[256,2], index: 0, kind: input, shape index: {}]
  %s1 = inlined_call_operand.vmem [shape: f32[1,32], index: 1, kind: input, shape index: {}]
  %s2 = inlined_call_operand.vmem [shape: f32[1,32], index: 2, kind: input, shape index: {}]
  %s3 = inlined_call_operand.vmem [shape: f32[1,32], index: 3, kind: input, shape index: {}]
  %s4 = inlined_call_operand.vmem [shape: f32[1,32], index: 4, kind: input, shape index: {}]
  %s5 = inlined_call_operand.vmem [shape: f32[256,16], index: 5, kind: input, shape index: {}]
  %s6 = inlined_call_operand.vmem [shape: f32[16,32], index: 6, kind: input, shape index: {}]
  %s7 = inlined_call_operand.vmem [shape: f32[16,32], index: 7, kind: input, shape index: {}]
  %s8 = inlined_call_operand.hbm [shape: f32[256,32], index: 8, kind: output, shape index: {0}]
  %s9 = inlined_call_operand.hbm [shape: f32[256,32], index: 9, kind: output, shape index: {1}]
  %10 = xla_tuple %s8, %s9
  %s11 = sld [smem:[#allocation0]]
  $region73: #{delayed_stack_layer0_forward.2} parent=0
    _
  %s13 = ssub.s32 1, %s11
  %s14 = scalar_select 0, %s13, %s11
  $region1: #{delayed_stack_layer0_forward.2} parent=0
    #allocation2 [shape = 'u8[131072]{0}', space=vmem, size = 0x20000, scoped, tag = 'output window, operand 0']
    #allocation3 [shape = 's32[2]{0}', space=sflag, size = 0x8, scoped, tag = 'scoped memory for delayed_stack_layer0_forward.2']
    #allocation4 [shape = 'u8[131072]{0}', space=vmem, size = 0x20000, scoped, tag = 'output window, operand 1']
    #allocation5 [shape = 's32[2]{0}', space=sflag, size = 0x8, scoped, tag = 'scoped memory for delayed_stack_layer0_forward.2']
    %15 = vsyncpa [#allocation3], 0
    %s16 = scalar_lea.sflag [#allocation3], 1
    %17 = vsyncpa %s16, 0
    %18 = vsyncpa [#allocation5], 0
    %s19 = scalar_lea.sflag [#allocation5], 1
    %20 = vsyncpa %s19, 0
    loop: start=0, step=1, limit=4
    $region2: #{delayed_stack_layer0_forward.2} parent=1 // loop_pre_header
      _
    $region3: #{delayed_stack_layer0_forward.2} parent=1 // loop_header
      %s22 = sphi 0, %s26
      %p23 = scmp.ge.s32.totalorder %s22, 4
      %s32 = sphi 0, %s34
      %s35 = sphi 0, %s32
      %s36 = sphi 0, %s35
      %s52 = sphi 0, %s36
      %s56 = sphi 0, %s56
      %s58 = sphi 0, %s56
      %s59 = sphi 0, %s58
      %s73 = sphi 0, %s59
      %s77 = sphi 0, %s77
      %s79 = sphi 0, %s77
      %s80 = sphi 0, %s79
      %s94 = sphi 0, %s80
      %s98 = sphi 0, %s98
      %s100 = sphi 0, %s98
      %s101 = sphi 0, %s100
      %s115 = sphi 0, %s101
      %s119 = sphi 0, %s119
      %s121 = sphi 0, %s119
      %s122 = sphi 0, %s121
      %s136 = sphi 0, %s122
      %s142 = sphi 0, %s144
      %s145 = sphi 0, %s142
      %s146 = sphi 0, %s145
      %s162 = sphi 0, %s146
      %s166 = sphi 0, %s166
      %s168 = sphi 0, %s166
      %s169 = sphi 0, %s168
      %s183 = sphi 0, %s169
      %s187 = sphi 0, %s187
      %s189 = sphi 0, %s187
      %s190 = sphi 0, %s189
      %s204 = sphi 0, %s190
      %s210 = sphi 0, %s212
      %s213 = sphi 0, %s210
      %s214 = sphi 0, %s213
      %s230 = sphi 0, %s214
      %s236 = sphi 0, %s238
      %s239 = sphi 0, %s236
      %s240 = sphi 0, %s239
      %s256 = sphi 0, %s240
    $region4: #{delayed_stack_layer0_forward.2} parent=1 // loop_header_branch
      %25 = sbr.rel (%p23) target = $region8
    $region5: #{delayed_stack_layer0_forward.2} parent=1 // loop_body
      %s27 = ssub.s32 %s22, 1
      %s28 = ssub.s32 %s22, 2
      %s29 = sadd.s32 %s22, 1
      %s30 = ssub.s32 %s22, %s29
      %p31 = scmp.eq.s32.totalorder %s30, 0
      %s33 = sadd.s32 %s32, 1
      %s34 = scalar_select %p31, %s32, %s33
      %p37 = pneg %p31
      %p38 = scmp.eq.s32.totalorder %s22, 1
      %p39 = por %p37, %p38
      %p40 = scmp.ne.s32.totalorder %s32, %s35
      %p41 = scmp.eq.s32.totalorder %s22, 0
      %p42 = por %p40, %p41
      %p43 = scmp.ne.s32.totalorder %s32, %s35
      %p44 = scmp.eq.s32.totalorder %s27, 1
      %p45 = por %p43, %p44
      %p46 = scmp.ne.s32.totalorder %s35, %s36
      %p47 = scmp.eq.s32.totalorder %s27, 0
      %p48 = por %p46, %p47
      %p49 = scmp.ne.s32.totalorder %s35, %s36
      %p50 = scmp.eq.s32.totalorder %s28, 1
      %p51 = por %p49, %p50
      %p53 = scmp.ne.s32.totalorder %s36, %s52
      %p54 = scmp.eq.s32.totalorder %s28, 0
      %p55 = por %p53, %p54
      %s57 = sadd.s32 %s56, 1
      %p60 = scmp.eq.s32.totalorder %s22, 1
      %p61 = scmp.ne.s32.totalorder %s56, %s58
      %p62 = scmp.eq.s32.totalorder %s22, 0
      %p63 = por %p61, %p62
      %p64 = scmp.ne.s32.totalorder %s56, %s58
      %p65 = scmp.eq.s32.totalorder %s27, 1
      %p66 = por %p64, %p65
      %p67 = scmp.ne.s32.totalorder %s58, %s59
      %p68 = scmp.eq.s32.totalorder %s27, 0
      %p69 = por %p67, %p68
      %p70 = scmp.ne.s32.totalorder %s58, %s59
      %p71 = scmp.eq.s32.totalorder %s28, 1
      %p72 = por %p70, %p71
      %p74 = scmp.ne.s32.totalorder %s59, %s73
      %p75 = scmp.eq.s32.totalorder %s28, 0
      %p76 = por %p74, %p75
      %s78 = sadd.s32 %s77, 1
      %p81 = scmp.eq.s32.totalorder %s22, 1
      %p82 = scmp.ne.s32.totalorder %s77, %s79
      %p83 = scmp.eq.s32.totalorder %s22, 0
      %p84 = por %p82, %p83
      %p85 = scmp.ne.s32.totalorder %s77, %s79
      %p86 = scmp.eq.s32.totalorder %s27, 1
      %p87 = por %p85, %p86
      %p88 = scmp.ne.s32.totalorder %s79, %s80
      %p89 = scmp.eq.s32.totalorder %s27, 0
      %p90 = por %p88, %p89
      %p91 = scmp.ne.s32.totalorder %s79, %s80
      %p92 = scmp.eq.s32.totalorder %s28, 1
      %p93 = por %p91, %p92
      %p95 = scmp.ne.s32.totalorder %s80, %s94
      %p96 = scmp.eq.s32.totalorder %s28, 0
      %p97 = por %p95, %p96
      %s99 = sadd.s32 %s98, 1
      %p102 = scmp.eq.s32.totalorder %s22, 1
      %p103 = scmp.ne.s32.totalorder %s98, %s100
      %p104 = scmp.eq.s32.totalorder %s22, 0
      %p105 = por %p103, %p104
      %p106 = scmp.ne.s32.totalorder %s98, %s100
      %p107 = scmp.eq.s32.totalorder %s27, 1
      %p108 = por %p106, %p107
      %p109 = scmp.ne.s32.totalorder %s100, %s101
      %p110 = scmp.eq.s32.totalorder %s27, 0
      %p111 = por %p109, %p110
      %p112 = scmp.ne.s32.totalorder %s100, %s101
      %p113 = scmp.eq.s32.totalorder %s28, 1
      %p114 = por %p112, %p113
      %p116 = scmp.ne.s32.totalorder %s101, %s115
      %p117 = scmp.eq.s32.totalorder %s28, 0
      %p118 = por %p116, %p117
      %s120 = sadd.s32 %s119, 1
      %p123 = scmp.eq.s32.totalorder %s22, 1
      %p124 = scmp.ne.s32.totalorder %s119, %s121
      %p125 = scmp.eq.s32.totalorder %s22, 0
      %p126 = por %p124, %p125
      %p127 = scmp.ne.s32.totalorder %s119, %s121
      %p128 = scmp.eq.s32.totalorder %s27, 1
      %p129 = por %p127, %p128
      %p130 = scmp.ne.s32.totalorder %s121, %s122
      %p131 = scmp.eq.s32.totalorder %s27, 0
      %p132 = por %p130, %p131
      %p133 = scmp.ne.s32.totalorder %s121, %s122
      %p134 = scmp.eq.s32.totalorder %s28, 1
      %p135 = por %p133, %p134
      %p137 = scmp.ne.s32.totalorder %s122, %s136
      %p138 = scmp.eq.s32.totalorder %s28, 0
      %p139 = por %p137, %p138
      %s140 = ssub.s32 %s22, %s29
      %p141 = scmp.eq.s32.totalorder %s140, 0
      %s143 = sadd.s32 %s142, 1
      %s144 = scalar_select %p141, %s142, %s143
      %p147 = pneg %p141
      %p148 = scmp.eq.s32.totalorder %s22, 1
      %p149 = por %p147, %p148
      %p150 = scmp.ne.s32.totalorder %s142, %s145
      %p151 = scmp.eq.s32.totalorder %s22, 0
      %p152 = por %p150, %p151
      %p153 = scmp.ne.s32.totalorder %s142, %s145
      %p154 = scmp.eq.s32.totalorder %s27, 1
      %p155 = por %p153, %p154
      %p156 = scmp.ne.s32.totalorder %s145, %s146
      %p157 = scmp.eq.s32.totalorder %s27, 0
      %p158 = por %p156, %p157
      %p159 = scmp.ne.s32.totalorder %s145, %s146
      %p160 = scmp.eq.s32.totalorder %s28, 1
      %p161 = por %p159, %p160
      %p163 = scmp.ne.s32.totalorder %s146, %s162
      %p164 = scmp.eq.s32.totalorder %s28, 0
      %p165 = por %p163, %p164
      %s167 = sadd.s32 %s166, 1
      %p170 = scmp.eq.s32.totalorder %s22, 1
      %p171 = scmp.ne.s32.totalorder %s166, %s168
      %p172 = scmp.eq.s32.totalorder %s22, 0
      %p173 = por %p171, %p172
      %p174 = scmp.ne.s32.totalorder %s166, %s168
      %p175 = scmp.eq.s32.totalorder %s27, 1
      %p176 = por %p174, %p175
      %p177 = scmp.ne.s32.totalorder %s168, %s169
      %p178 = scmp.eq.s32.totalorder %s27, 0
      %p179 = por %p177, %p178
      %p180 = scmp.ne.s32.totalorder %s168, %s169
      %p181 = scmp.eq.s32.totalorder %s28, 1
      %p182 = por %p180, %p181
      %p184 = scmp.ne.s32.totalorder %s169, %s183
      %p185 = scmp.eq.s32.totalorder %s28, 0
      %p186 = por %p184, %p185
      %s188 = sadd.s32 %s187, 1
      %p191 = scmp.eq.s32.totalorder %s22, 1
      %p192 = scmp.ne.s32.totalorder %s187, %s189
      %p193 = scmp.eq.s32.totalorder %s22, 0
      %p194 = por %p192, %p193
      %p195 = scmp.ne.s32.totalorder %s187, %s189
      %p196 = scmp.eq.s32.totalorder %s27, 1
      %p197 = por %p195, %p196
      %p198 = scmp.ne.s32.totalorder %s189, %s190
      %p199 = scmp.eq.s32.totalorder %s27, 0
      %p200 = por %p198, %p199
      %p201 = scmp.ne.s32.totalorder %s189, %s190
      %p202 = scmp.eq.s32.totalorder %s28, 1
      %p203 = por %p201, %p202
      %p205 = scmp.ne.s32.totalorder %s190, %s204
      %p206 = scmp.eq.s32.totalorder %s28, 0
      %p207 = por %p205, %p206
      %s208 = ssub.s32 %s22, %s29
      %p209 = scmp.eq.s32.totalorder %s208, 0
      %s211 = sadd.s32 %s210, 1
      %s212 = scalar_select %p209, %s210, %s211
      %p215 = pneg %p209
      %p216 = scmp.eq.s32.totalorder %s22, 1
      %p217 = por %p215, %p216
      %p218 = scmp.ne.s32.totalorder %s210, %s213
      %p219 = scmp.eq.s32.totalorder %s22, 0
      %p220 = por %p218, %p219
      %p221 = scmp.ne.s32.totalorder %s210, %s213
      %p222 = scmp.eq.s32.totalorder %s27, 1
      %p223 = por %p221, %p222
      %p224 = scmp.ne.s32.totalorder %s213, %s214
      %p225 = scmp.eq.s32.totalorder %s27, 0
      %p226 = por %p224, %p225
      %p227 = scmp.ne.s32.totalorder %s213, %s214
      %p228 = scmp.eq.s32.totalorder %s28, 1
      %p229 = por %p227, %p228
      %p231 = scmp.ne.s32.totalorder %s214, %s230
      %p232 = scmp.eq.s32.totalorder %s28, 0
      %p233 = por %p231, %p232
      %s234 = ssub.s32 %s22, %s29
      %p235 = scmp.eq.s32.totalorder %s234, 0
      %s237 = sadd.s32 %s236, 1
      %s238 = scalar_select %p235, %s236, %s237
      %p241 = pneg %p235
      %p242 = scmp.eq.s32.totalorder %s22, 1
      %p243 = por %p241, %p242
      %p244 = scmp.ne.s32.totalorder %s236, %s239
      %p245 = scmp.eq.s32.totalorder %s22, 0
      %p246 = por %p244, %p245
      %p247 = scmp.ne.s32.totalorder %s236, %s239
      %p248 = scmp.eq.s32.totalorder %s27, 1
      %p249 = por %p247, %p248
      %p250 = scmp.ne.s32.totalorder %s239, %s240
      %p251 = scmp.eq.s32.totalorder %s27, 0
      %p252 = por %p250, %p251
      %p253 = scmp.ne.s32.totalorder %s239, %s240
      %p254 = scmp.eq.s32.totalorder %s28, 1
      %p255 = por %p253, %p254
      %p257 = scmp.ne.s32.totalorder %s240, %s256
      %p258 = scmp.eq.s32.totalorder %s28, 0
      %p259 = por %p257, %p258
      %p260 = scmp.le.s32.totalorder 1, %s22
      %p261 = scmp.lt.s32.totalorder %s22, 3
      %p262 = pnand %p260, %p261
      %p263 = pneg %p262
      // Predicated region
      $region9: #{delayed_stack_layer0_forward.2} parent=5 // pred_check
        _
      $region10: #{delayed_stack_layer0_forward.2} parent=5 // pred_check_branch
        %265 = sbr.rel (%p262) target = $region12
      $region11: #{delayed_stack_layer0_forward.2} parent=5 // pred_region
        %s266 = ssub.s32 %s22, 1
        // Predicated region
        $region13: #{delayed_stack_layer0_forward.2} parent=11 // pred_check
          %p267 = pneg %p69
        $region14: #{delayed_stack_layer0_forward.2} parent=11 // pred_check_branch
          %269 = sbr.rel (%p267) target = $region16
        $region15: #{delayed_stack_layer0_forward.2} parent=11 // pred_region
          _
        $region16: #{delayed_stack_layer0_forward.2} parent=11 // pred_fallthru
          _
        // Predicated region
        $region17: #{delayed_stack_layer0_forward.2} parent=11 // pred_check
          %p270 = pneg %p90
        $region18: #{delayed_stack_layer0_forward.2} parent=11 // pred_check_branch
          %272 = sbr.rel (%p270) target = $region20
        $region19: #{delayed_stack_layer0_forward.2} parent=11 // pred_region
          _
        $region20: #{delayed_stack_layer0_forward.2} parent=11 // pred_fallthru
          _
        // Predicated region
        $region21: #{delayed_stack_layer0_forward.2} parent=11 // pred_check
          %p273 = pneg %p111
        $region22: #{delayed_stack_layer0_forward.2} parent=11 // pred_check_branch
          %275 = sbr.rel (%p273) target = $region24
        $region23: #{delayed_stack_layer0_forward.2} parent=11 // pred_region
          _
        $region24: #{delayed_stack_layer0_forward.2} parent=11 // pred_fallthru
          _
        // Predicated region
        $region25: #{delayed_stack_layer0_forward.2} parent=11 // pred_check
          %p276 = pneg %p132
        $region26: #{delayed_stack_layer0_forward.2} parent=11 // pred_check_branch
          %278 = sbr.rel (%p276) target = $region28
        $region27: #{delayed_stack_layer0_forward.2} parent=11 // pred_region
          _
        $region28: #{delayed_stack_layer0_forward.2} parent=11 // pred_fallthru
          _
        // Predicated region
        $region29: #{delayed_stack_layer0_forward.2} parent=11 // pred_check
          %p279 = pneg %p179
        $region30: #{delayed_stack_layer0_forward.2} parent=11 // pred_check_branch
          %281 = sbr.rel (%p279) target = $region32
        $region31: #{delayed_stack_layer0_forward.2} parent=11 // pred_region
          _
        $region32: #{delayed_stack_layer0_forward.2} parent=11 // pred_fallthru
          _
        // Predicated region
        $region33: #{delayed_stack_layer0_forward.2} parent=11 // pred_check
          %p282 = pneg %p200
        $region34: #{delayed_stack_layer0_forward.2} parent=11 // pred_check_branch
          %284 = sbr.rel (%p282) target = $region36
        $region35: #{delayed_stack_layer0_forward.2} parent=11 // pred_region
          _
        $region36: #{delayed_stack_layer0_forward.2} parent=11 // pred_fallthru
          _
      $region12: #{delayed_stack_layer0_forward.2} parent=5 // pred_fallthru
        _
      %p285 = scmp.lt.s32.totalorder %s22, 2
      // Predicated region
      $region37: #{delayed_stack_layer0_forward.2} parent=5 // pred_check
        %p286 = pneg %p285
      $region38: #{delayed_stack_layer0_forward.2} parent=5 // pred_check_branch
        %288 = sbr.rel (%p286) target = $region40
      $region39: #{delayed_stack_layer0_forward.2} parent=5 // pred_region
        // Predicated region
        $region41: #{delayed_stack_layer0_forward.2} parent=39 // pred_check
          %p289 = pneg %p42
        $region42: #{delayed_stack_layer0_forward.2} parent=39 // pred_check_branch
          %291 = sbr.rel (%p289) target = $region44
        $region43: #{delayed_stack_layer0_forward.2} parent=39 // pred_region
          %s292 = smul.u32 16, %s22
          %p293 = scmp.lt.s32.totalorder %s292, 31
          %s294 = scalar_select %p293, %s292, 31
          %s295 = smul.addr %s294, 8
          %s296 = scalar_lea.vmem %s0, %s295
          %s297 = smul.u32 16, %s22
        $region44: #{delayed_stack_layer0_forward.2} parent=39 // pred_fallthru
          _
        // Predicated region
        $region45: #{delayed_stack_layer0_forward.2} parent=39 // pred_check
          %p298 = pneg %p152
        $region46: #{delayed_stack_layer0_forward.2} parent=39 // pred_check_branch
          %300 = sbr.rel (%p298) target = $region48
        $region47: #{delayed_stack_layer0_forward.2} parent=39 // pred_region
          %s301 = smul.u32 16, %s22
          %p302 = scmp.lt.s32.totalorder %s301, 31
          %s303 = scalar_select %p302, %s301, 31
          %s304 = smul.addr %s303, 8
          %s305 = scalar_lea.vmem %s5, %s304
          %s306 = smul.u32 16, %s22
        $region48: #{delayed_stack_layer0_forward.2} parent=39 // pred_fallthru
          _
      $region40: #{delayed_stack_layer0_forward.2} parent=5 // pred_fallthru
        _
      %p307 = scmp.le.s32.totalorder 1, %s22
      %p308 = scmp.lt.s32.totalorder %s22, 3
      %p309 = pnand %p307, %p308
      %p310 = pneg %p309
      // Predicated region
      $region49: #{delayed_stack_layer0_forward.2} parent=5 // pred_check
        _
      $region50: #{delayed_stack_layer0_forward.2} parent=5 // pred_check_branch
        %312 = sbr.rel (%p309) target = $region52
      $region51: #{delayed_stack_layer0_forward.2} parent=5 // pred_region
        %s313 = ssub.s32 %s22, 1
        %s314 = smul.u32 16, %s27
        %p315 = scmp.lt.s32.totalorder %s314, 31
        %s316 = scalar_select %p315, %s314, 31
        %s317 = smul.addr %s316, 8
        %s318 = scalar_lea.vmem %s0, %s317
        %p319 = pneg %p48
        %p320 = pneg %p45
        %p321 = pneg %p69
        %p322 = pneg %p66
        %p323 = pneg %p90
        %p324 = pneg %p87
        %p325 = pneg %p111
        %p326 = pneg %p108
        %p327 = pneg %p132
        %p328 = pneg %p129
        %s329 = smul.u32 16, %s27
        %p330 = scmp.lt.s32.totalorder %s329, 31
        %s331 = scalar_select %p330, %s329, 31
        %s332 = smul.addr %s331, 8
        %s333 = scalar_lea.vmem %s5, %s332
        %p334 = pneg %p158
        %p335 = pneg %p155
        %p336 = pneg %p179
        %p337 = pneg %p176
        %p338 = pneg %p200
        %p339 = pneg %p197
        %p340 = pneg %p226
        %p341 = pneg %p223
        %s342 = sand.u32 %s213, 1
        %s343 = scalar_lea.sflag [#allocation3], %s342
        %s344 = sand.u32 %s213, 1
        %s345 = smul.addr %s344, 128
        %s346 = scalar_lea.vmem [#allocation2], %s345
        %p347 = pneg %p252
        %p348 = pneg %p249
        %s349 = sand.u32 %s239, 1
        %s350 = scalar_lea.sflag [#allocation5], %s349
        %s351 = sand.u32 %s239, 1
        %s352 = smul.addr %s351, 128
        %s353 = scalar_lea.vmem [#allocation4], %s352
        %s354 = smul.u32 16, %s27
        %p355 = scmp.lt.s32.totalorder %s354, 31
        %s356 = scalar_select %p355, %s354, 31
        %s357 = smul.addr %s356, 8
        %s358 = scalar_lea.vmem %s0, %s357
        %s359 = smul.u32 16, %s27
        %s360 = smul.u32 16, %s27
        %p361 = scmp.lt.s32.totalorder %s360, 31
        %s362 = scalar_select %p361, %s360, 31
        %s363 = smul.addr %s362, 8
        %s364 = scalar_lea.vmem %s5, %s363
        %s365 = smul.u32 16, %s27
        %s366 = smul.u32 16, %s27
        %s367 = smul.u32 16, %s27
        %v368 = vld [vmem:[%s358] sm:$0xff]
        %v369 = vld [vmem:[%s358 + $0x8] sm:$0xff]
        %v370 = vld [vmem:[%s358 + $0x10] sm:$0xff]
        %v371 = vld [vmem:[%s358 + $0x18] sm:$0xff]
        %v372 = vld [vmem:[%s358 + $0x20] sm:$0xff]
        %v373 = vld [vmem:[%s358 + $0x28] sm:$0xff]
        %v374 = vld [vmem:[%s358 + $0x30] sm:$0xff]
        %v375 = vld [vmem:[%s358 + $0x38] sm:$0xff]
        %v376 = vld [vmem:[%s358 + $0x40] sm:$0xff]
        %v377 = vld [vmem:[%s358 + $0x48] sm:$0xff]
        %v378 = vld [vmem:[%s358 + $0x50] sm:$0xff]
        %v379 = vld [vmem:[%s358 + $0x58] sm:$0xff]
        %v380 = vld [vmem:[%s358 + $0x60] sm:$0xff]
        %v381 = vld [vmem:[%s358 + $0x68] sm:$0xff]
        %v382 = vld [vmem:[%s358 + $0x70] sm:$0xff]
        %v383 = vld [vmem:[%s358 + $0x78] sm:$0xff]
        %v384 = vld [vmem:[%s364] sm:$0xff]
        %v385 = vld [vmem:[%s364 + $0x8] sm:$0xff]
        %v386 = vld [vmem:[%s364 + $0x10] sm:$0xff]
        %v387 = vld [vmem:[%s364 + $0x18] sm:$0xff]
        %v388 = vld [vmem:[%s364 + $0x20] sm:$0xff]
        %v389 = vld [vmem:[%s364 + $0x28] sm:$0xff]
        %v390 = vld [vmem:[%s364 + $0x30] sm:$0xff]
        %v391 = vld [vmem:[%s364 + $0x38] sm:$0xff]
        %v392 = vld [vmem:[%s364 + $0x40] sm:$0xff]
        %v393 = vld [vmem:[%s364 + $0x48] sm:$0xff]
        %v394 = vld [vmem:[%s364 + $0x50] sm:$0xff]
        %v395 = vld [vmem:[%s364 + $0x58] sm:$0xff]
        %v396 = vld [vmem:[%s364 + $0x60] sm:$0xff]
        %v397 = vld [vmem:[%s364 + $0x68] sm:$0xff]
        %v398 = vld [vmem:[%s364 + $0x70] sm:$0xff]
        %v399 = vld [vmem:[%s364 + $0x78] sm:$0xff]
        %v400 = vld [vmem:[%s1] sm:$0x1]
        %402 = vset.pattern.permute.xlu0 0
        %403 = vperm.xlu0 %402, %v368
        %v404 = vpop.permute.xlu0 %403
        %407 = vset.pattern.permute.xlu0 0
        %408 = vperm.xlu0 %407, %v369
        %v409 = vpop.permute.xlu0 %408
        %412 = vset.pattern.permute.xlu0 0
        %413 = vperm.xlu0 %412, %v370
        %v414 = vpop.permute.xlu0 %413
        %417 = vset.pattern.permute.xlu0 0
        %418 = vperm.xlu0 %417, %v371
        %v419 = vpop.permute.xlu0 %418
        %422 = vset.pattern.permute.xlu0 0
        %423 = vperm.xlu0 %422, %v372
        %v424 = vpop.permute.xlu0 %423
        %427 = vset.pattern.permute.xlu0 0
        %428 = vperm.xlu0 %427, %v373
        %v429 = vpop.permute.xlu0 %428
        %432 = vset.pattern.permute.xlu0 0
        %433 = vperm.xlu0 %432, %v374
        %v434 = vpop.permute.xlu0 %433
        %437 = vset.pattern.permute.xlu0 0
        %438 = vperm.xlu0 %437, %v375
        %v439 = vpop.permute.xlu0 %438
        %442 = vset.pattern.permute.xlu0 0
        %443 = vperm.xlu0 %442, %v376
        %v444 = vpop.permute.xlu0 %443
        %447 = vset.pattern.permute.xlu0 0
        %448 = vperm.xlu0 %447, %v377
        %v449 = vpop.permute.xlu0 %448
        %452 = vset.pattern.permute.xlu0 0
        %453 = vperm.xlu0 %452, %v378
        %v454 = vpop.permute.xlu0 %453
        %457 = vset.pattern.permute.xlu0 0
        %458 = vperm.xlu0 %457, %v379
        %v459 = vpop.permute.xlu0 %458
        %462 = vset.pattern.permute.xlu0 0
        %463 = vperm.xlu0 %462, %v380
        %v464 = vpop.permute.xlu0 %463
        %467 = vset.pattern.permute.xlu0 0
        %468 = vperm.xlu0 %467, %v381
        %v469 = vpop.permute.xlu0 %468
        %472 = vset.pattern.permute.xlu0 0
        %473 = vperm.xlu0 %472, %v382
        %v474 = vpop.permute.xlu0 %473
        %477 = vset.pattern.permute.xlu0 0
        %478 = vperm.xlu0 %477, %v383
        %v479 = vpop.permute.xlu0 %478
        %v482 = vperm.slane %v400, 0
        %v484 = vmul.f32 %v404, %v482
        %v485 = vmul.f32 %v409, %v482
        %v486 = vmul.f32 %v414, %v482
        %v487 = vmul.f32 %v419, %v482
        %v488 = vmul.f32 %v424, %v482
        %v489 = vmul.f32 %v429, %v482
        %v490 = vmul.f32 %v434, %v482
        %v491 = vmul.f32 %v439, %v482
        %v492 = vmul.f32 %v444, %v482
        %v493 = vmul.f32 %v449, %v482
        %v494 = vmul.f32 %v454, %v482
        %v495 = vmul.f32 %v459, %v482
        %v496 = vmul.f32 %v464, %v482
        %v497 = vmul.f32 %v469, %v482
        %v498 = vmul.f32 %v474, %v482
        %v499 = vmul.f32 %v479, %v482
        %v500 = vld [vmem:[%s2] sm:$0x1]
        %v502 = vperm.slane %v500, 0
        %v504 = vadd.f32 %v484, %v502
        %v505 = vadd.f32 %v485, %v502
        %v506 = vadd.f32 %v486, %v502
        %v507 = vadd.f32 %v487, %v502
        %v508 = vadd.f32 %v488, %v502
        %v509 = vadd.f32 %v489, %v502
        %v510 = vadd.f32 %v490, %v502
        %v511 = vadd.f32 %v491, %v502
        %v512 = vadd.f32 %v492, %v502
        %v513 = vadd.f32 %v493, %v502
        %v514 = vadd.f32 %v494, %v502
        %v515 = vadd.f32 %v495, %v502
        %v516 = vadd.f32 %v496, %v502
        %v517 = vadd.f32 %v497, %v502
        %v518 = vadd.f32 %v498, %v502
        %v519 = vadd.f32 %v499, %v502
        %v520 = vld [vmem:[%s6] sm:$0xff]
        %v521 = vld [vmem:[%s6 + $0x8] sm:$0xff]
        %vm522 = vcmask 130048
        %v524 = vsel %vm522, %v384, 0
        %v527 = vsel %vm522, %v385, 0
        %v530 = vsel %vm522, %v386, 0
        %v533 = vsel %vm522, %v387, 0
        %v536 = vsel %vm522, %v388, 0
        %v539 = vsel %vm522, %v389, 0
        %v542 = vsel %vm522, %v390, 0
        %v545 = vsel %vm522, %v391, 0
        %v548 = vsel %vm522, %v392, 0
        %v551 = vsel %vm522, %v393, 0
        %v554 = vsel %vm522, %v394, 0
        %v557 = vsel %vm522, %v395, 0
        %v560 = vsel %vm522, %v396, 0
        %v563 = vsel %vm522, %v397, 0
        %v566 = vsel %vm522, %v398, 0
        %v569 = vsel %vm522, %v399, 0
        %571 = vmatpush.msra.mxu0 0.0
        %572 = vmatpush.msra.mxu0 0.0
        %573 = vmatpush.msra.mxu0 0.0
        %574 = vmatpush.msra.mxu0 0.0
        %575 = vmatpush.msra.mxu0 0.0
        %576 = vmatpush.msra.mxu0 0.0
        %577 = vmatpush.msra.mxu0 0.0
        %578 = vmatpush.msra.mxu0 0.0
        %579 = vmatpush.msra.mxu0 0.0
        %580 = vmatpush.msra.mxu0 0.0
        %581 = vmatpush.msra.mxu0 0.0
        %582 = vmatpush.msra.mxu0 0.0
        %583 = vmatpush.msra.mxu0 0.0
        %584 = vmatpush.msra.mxu0 0.0
        %585 = vmatpush.msra.mxu0 %v521
        %586 = vmatpush.msra.mxu0 %v520
        %587 = vmatmul.f32.gmra.mxu0 %v524
        %v588 = vpop.f32.mrf.mxu0
        %v589 = vadd.f32 0.0, %v588
        %590 = vmatmul.f32.gmra.mxu0 %v527
        %v591 = vpop.f32.mrf.mxu0
        %v592 = vadd.f32 0.0, %v591
        %593 = vmatmul.f32.gmra.mxu0 %v530
        %v594 = vpop.f32.mrf.mxu0
        %v595 = vadd.f32 0.0, %v594
        %596 = vmatmul.f32.gmra.mxu0 %v533
        %v597 = vpop.f32.mrf.mxu0
        %v598 = vadd.f32 0.0, %v597
        %599 = vmatmul.f32.gmra.mxu0 %v536
        %v600 = vpop.f32.mrf.mxu0
        %v601 = vadd.f32 0.0, %v600
        %602 = vmatmul.f32.gmra.mxu0 %v539
        %v603 = vpop.f32.mrf.mxu0
        %v604 = vadd.f32 0.0, %v603
        %605 = vmatmul.f32.gmra.mxu0 %v542
        %v606 = vpop.f32.mrf.mxu0
        %v607 = vadd.f32 0.0, %v606
        %608 = vmatmul.f32.gmra.mxu0 %v545
        %v609 = vpop.f32.mrf.mxu0
        %v610 = vadd.f32 0.0, %v609
        %611 = vmatmul.f32.gmra.mxu0 %v548
        %v612 = vpop.f32.mrf.mxu0
        %v613 = vadd.f32 0.0, %v612
        %614 = vmatmul.f32.gmra.mxu0 %v551
        %v615 = vpop.f32.mrf.mxu0
        %v616 = vadd.f32 0.0, %v615
        %617 = vmatmul.f32.gmra.mxu0 %v554
        %v618 = vpop.f32.mrf.mxu0
        %v619 = vadd.f32 0.0, %v618
        %620 = vmatmul.f32.gmra.mxu0 %v557
        %v621 = vpop.f32.mrf.mxu0
        %v622 = vadd.f32 0.0, %v621
        %623 = vmatmul.f32.gmra.mxu0 %v560
        %v624 = vpop.f32.mrf.mxu0
        %v625 = vadd.f32 0.0, %v624
        %626 = vmatmul.f32.gmra.mxu0 %v563
        %v627 = vpop.f32.mrf.mxu0
        %v628 = vadd.f32 0.0, %v627
        %629 = vmatmul.f32.gmra.mxu0 %v566
        %v630 = vpop.f32.mrf.mxu0
        %v631 = vadd.f32 0.0, %v630
        %632 = vmatmul.f32.gmra.mxu0 %v569
        %v633 = vpop.f32.mrf.mxu0
        %v634 = vadd.f32 0.0, %v633
        %635 = vdwg.mxu0
        %v636 = vadd.f32 %v504, %v589
        %v637 = vadd.f32 %v505, %v592
        %v638 = vadd.f32 %v506, %v595
        %v639 = vadd.f32 %v507, %v598
        %v640 = vadd.f32 %v508, %v601
        %v641 = vadd.f32 %v509, %v604
        %v642 = vadd.f32 %v510, %v607
        %v643 = vadd.f32 %v511, %v610
        %v644 = vadd.f32 %v512, %v613
        %v645 = vadd.f32 %v513, %v616
        %v646 = vadd.f32 %v514, %v619
        %v647 = vadd.f32 %v515, %v622
        %v648 = vadd.f32 %v516, %v625
        %v649 = vadd.f32 %v517, %v628
        %v650 = vadd.f32 %v518, %v631
        %v651 = vadd.f32 %v519, %v634
        %v652 = vld [vmem:[%s3] sm:$0x1]
        %653 = vset.pattern.permute.xlu0 1
        %654 = vperm.xlu0 %653, %v368
        %v655 = vpop.permute.xlu0 %654
        %657 = vset.pattern.permute.xlu0 1
        %658 = vperm.xlu0 %657, %v369
        %v659 = vpop.permute.xlu0 %658
        %661 = vset.pattern.permute.xlu0 1
        %662 = vperm.xlu0 %661, %v370
        %v663 = vpop.permute.xlu0 %662
        %665 = vset.pattern.permute.xlu0 1
        %666 = vperm.xlu0 %665, %v371
        %v667 = vpop.permute.xlu0 %666
        %669 = vset.pattern.permute.xlu0 1
        %670 = vperm.xlu0 %669, %v372
        %v671 = vpop.permute.xlu0 %670
        %673 = vset.pattern.permute.xlu0 1
        %674 = vperm.xlu0 %673, %v373
        %v675 = vpop.permute.xlu0 %674
        %677 = vset.pattern.permute.xlu0 1
        %678 = vperm.xlu0 %677, %v374
        %v679 = vpop.permute.xlu0 %678
        %681 = vset.pattern.permute.xlu0 1
        %682 = vperm.xlu0 %681, %v375
        %v683 = vpop.permute.xlu0 %682
        %685 = vset.pattern.permute.xlu0 1
        %686 = vperm.xlu0 %685, %v376
        %v687 = vpop.permute.xlu0 %686
        %689 = vset.pattern.permute.xlu0 1
        %690 = vperm.xlu0 %689, %v377
        %v691 = vpop.permute.xlu0 %690
        %693 = vset.pattern.permute.xlu0 1
        %694 = vperm.xlu0 %693, %v378
        %v695 = vpop.permute.xlu0 %694
        %697 = vset.pattern.permute.xlu0 1
        %698 = vperm.xlu0 %697, %v379
        %v699 = vpop.permute.xlu0 %698
        %701 = vset.pattern.permute.xlu0 1
        %702 = vperm.xlu0 %701, %v380
        %v703 = vpop.permute.xlu0 %702
        %705 = vset.pattern.permute.xlu0 1
        %706 = vperm.xlu0 %705, %v381
        %v707 = vpop.permute.xlu0 %706
        %709 = vset.pattern.permute.xlu0 1
        %710 = vperm.xlu0 %709, %v382
        %v711 = vpop.permute.xlu0 %710
        %713 = vset.pattern.permute.xlu0 1
        %714 = vperm.xlu0 %713, %v383
        %v715 = vpop.permute.xlu0 %714
        %v718 = vperm.slane %v652, 0
        %v720 = vmul.f32 %v655, %v718
        %v721 = vmul.f32 %v659, %v718
        %v722 = vmul.f32 %v663, %v718
        %v723 = vmul.f32 %v667, %v718
        %v724 = vmul.f32 %v671, %v718
        %v725 = vmul.f32 %v675, %v718
        %v726 = vmul.f32 %v679, %v718
        %v727 = vmul.f32 %v683, %v718
        %v728 = vmul.f32 %v687, %v718
        %v729 = vmul.f32 %v691, %v718
        %v730 = vmul.f32 %v695, %v718
        %v731 = vmul.f32 %v699, %v718
        %v732 = vmul.f32 %v703, %v718
        %v733 = vmul.f32 %v707, %v718
        %v734 = vmul.f32 %v711, %v718
        %v735 = vmul.f32 %v715, %v718
        %v736 = vld [vmem:[%s4] sm:$0x1]
        %v738 = vperm.slane %v736, 0
        %v740 = vadd.f32 %v720, %v738
        %v741 = vadd.f32 %v721, %v738
        %v742 = vadd.f32 %v722, %v738
        %v743 = vadd.f32 %v723, %v738
        %v744 = vadd.f32 %v724, %v738
        %v745 = vadd.f32 %v725, %v738
        %v746 = vadd.f32 %v726, %v738
        %v747 = vadd.f32 %v727, %v738
        %v748 = vadd.f32 %v728, %v738
        %v749 = vadd.f32 %v729, %v738
        %v750 = vadd.f32 %v730, %v738
        %v751 = vadd.f32 %v731, %v738
        %v752 = vadd.f32 %v732, %v738
        %v753 = vadd.f32 %v733, %v738
        %v754 = vadd.f32 %v734, %v738
        %v755 = vadd.f32 %v735, %v738
        %v756 = vld [vmem:[%s7] sm:$0xff]
        %v757 = vld [vmem:[%s7 + $0x8] sm:$0xff]
        %758 = vmatpush.msra.mxu0 0.0
        %759 = vmatpush.msra.mxu0 0.0
        %760 = vmatpush.msra.mxu0 0.0
        %761 = vmatpush.msra.mxu0 0.0
        %762 = vmatpush.msra.mxu0 0.0
        %763 = vmatpush.msra.mxu0 0.0
        %764 = vmatpush.msra.mxu0 0.0
        %765 = vmatpush.msra.mxu0 0.0
        %766 = vmatpush.msra.mxu0 0.0
        %767 = vmatpush.msra.mxu0 0.0
        %768 = vmatpush.msra.mxu0 0.0
        %769 = vmatpush.msra.mxu0 0.0
        %770 = vmatpush.msra.mxu0 0.0
        %771 = vmatpush.msra.mxu0 0.0
        %772 = vmatpush.msra.mxu0 %v757
        %773 = vmatpush.msra.mxu0 %v756
        %774 = vmatmul.f32.gmra.mxu0 %v524
        %v775 = vpop.f32.mrf.mxu0
        %v776 = vadd.f32 0.0, %v775
        %777 = vmatmul.f32.gmra.mxu0 %v527
        %v778 = vpop.f32.mrf.mxu0
        %v779 = vadd.f32 0.0, %v778
        %780 = vmatmul.f32.gmra.mxu0 %v530
        %v781 = vpop.f32.mrf.mxu0
        %v782 = vadd.f32 0.0, %v781
        %783 = vmatmul.f32.gmra.mxu0 %v533
        %v784 = vpop.f32.mrf.mxu0
        %v785 = vadd.f32 0.0, %v784
        %786 = vmatmul.f32.gmra.mxu0 %v536
        %v787 = vpop.f32.mrf.mxu0
        %v788 = vadd.f32 0.0, %v787
        %789 = vmatmul.f32.gmra.mxu0 %v539
        %v790 = vpop.f32.mrf.mxu0
        %v791 = vadd.f32 0.0, %v790
        %792 = vmatmul.f32.gmra.mxu0 %v542
        %v793 = vpop.f32.mrf.mxu0
        %v794 = vadd.f32 0.0, %v793
        %795 = vmatmul.f32.gmra.mxu0 %v545
        %v796 = vpop.f32.mrf.mxu0
        %v797 = vadd.f32 0.0, %v796
        %798 = vmatmul.f32.gmra.mxu0 %v548
        %v799 = vpop.f32.mrf.mxu0
        %v800 = vadd.f32 0.0, %v799
        %801 = vmatmul.f32.gmra.mxu0 %v551
        %v802 = vpop.f32.mrf.mxu0
        %v803 = vadd.f32 0.0, %v802
        %804 = vmatmul.f32.gmra.mxu0 %v554
        %v805 = vpop.f32.mrf.mxu0
        %v806 = vadd.f32 0.0, %v805
        %807 = vmatmul.f32.gmra.mxu0 %v557
        %v808 = vpop.f32.mrf.mxu0
        %v809 = vadd.f32 0.0, %v808
        %810 = vmatmul.f32.gmra.mxu0 %v560
        %v811 = vpop.f32.mrf.mxu0
        %v812 = vadd.f32 0.0, %v811
        %813 = vmatmul.f32.gmra.mxu0 %v563
        %v814 = vpop.f32.mrf.mxu0
        %v815 = vadd.f32 0.0, %v814
        %816 = vmatmul.f32.gmra.mxu0 %v566
        %v817 = vpop.f32.mrf.mxu0
        %v818 = vadd.f32 0.0, %v817
        %819 = vmatmul.f32.gmra.mxu0 %v569
        %v820 = vpop.f32.mrf.mxu0
        %v821 = vadd.f32 0.0, %v820
        %822 = vdwg.mxu0
        %v823 = vadd.f32 %v740, %v776
        %v824 = vadd.f32 %v741, %v779
        %v825 = vadd.f32 %v742, %v782
        %v826 = vadd.f32 %v743, %v785
        %v827 = vadd.f32 %v744, %v788
        %v828 = vadd.f32 %v745, %v791
        %v829 = vadd.f32 %v746, %v794
        %v830 = vadd.f32 %v747, %v797
        %v831 = vadd.f32 %v748, %v800
        %v832 = vadd.f32 %v749, %v803
        %v833 = vadd.f32 %v750, %v806
        %v834 = vadd.f32 %v751, %v809
        %v835 = vadd.f32 %v752, %v812
        %v836 = vadd.f32 %v753, %v815
        %v837 = vadd.f32 %v754, %v818
        %v838 = vadd.f32 %v755, %v821
        %vm839 = vcmask 261120
        %840 = vst.msk [vmem:[%s346] sm:$0xff] %vm839, %v636
        %841 = vst.msk [vmem:[%s346 + $0x8] sm:$0xff] %vm839, %v637
        %842 = vst.msk [vmem:[%s346 + $0x10] sm:$0xff] %vm839, %v638
        %843 = vst.msk [vmem:[%s346 + $0x18] sm:$0xff] %vm839, %v639
        %844 = vst.msk [vmem:[%s346 + $0x20] sm:$0xff] %vm839, %v640
        %845 = vst.msk [vmem:[%s346 + $0x28] sm:$0xff] %vm839, %v641
        %846 = vst.msk [vmem:[%s346 + $0x30] sm:$0xff] %vm839, %v642
        %847 = vst.msk [vmem:[%s346 + $0x38] sm:$0xff] %vm839, %v643
        %848 = vst.msk [vmem:[%s346 + $0x40] sm:$0xff] %vm839, %v644
        %849 = vst.msk [vmem:[%s346 + $0x48] sm:$0xff] %vm839, %v645
        %850 = vst.msk [vmem:[%s346 + $0x50] sm:$0xff] %vm839, %v646
        %851 = vst.msk [vmem:[%s346 + $0x58] sm:$0xff] %vm839, %v647
        %852 = vst.msk [vmem:[%s346 + $0x60] sm:$0xff] %vm839, %v648
        %853 = vst.msk [vmem:[%s346 + $0x68] sm:$0xff] %vm839, %v649
        %854 = vst.msk [vmem:[%s346 + $0x70] sm:$0xff] %vm839, %v650
        %855 = vst.msk [vmem:[%s346 + $0x78] sm:$0xff] %vm839, %v651
        %856 = vst.msk [vmem:[%s353] sm:$0xff] %vm839, %v823
        %857 = vst.msk [vmem:[%s353 + $0x8] sm:$0xff] %vm839, %v824
        %858 = vst.msk [vmem:[%s353 + $0x10] sm:$0xff] %vm839, %v825
        %859 = vst.msk [vmem:[%s353 + $0x18] sm:$0xff] %vm839, %v826
        %860 = vst.msk [vmem:[%s353 + $0x20] sm:$0xff] %vm839, %v827
        %861 = vst.msk [vmem:[%s353 + $0x28] sm:$0xff] %vm839, %v828
        %862 = vst.msk [vmem:[%s353 + $0x30] sm:$0xff] %vm839, %v829
        %863 = vst.msk [vmem:[%s353 + $0x38] sm:$0xff] %vm839, %v830
        %864 = vst.msk [vmem:[%s353 + $0x40] sm:$0xff] %vm839, %v831
        %865 = vst.msk [vmem:[%s353 + $0x48] sm:$0xff] %vm839, %v832
        %866 = vst.msk [vmem:[%s353 + $0x50] sm:$0xff] %vm839, %v833
        %867 = vst.msk [vmem:[%s353 + $0x58] sm:$0xff] %vm839, %v834
        %868 = vst.msk [vmem:[%s353 + $0x60] sm:$0xff] %vm839, %v835
        %869 = vst.msk [vmem:[%s353 + $0x68] sm:$0xff] %vm839, %v836
        %870 = vst.msk [vmem:[%s353 + $0x70] sm:$0xff] %vm839, %v837
        %871 = vst.msk [vmem:[%s353 + $0x78] sm:$0xff] %vm839, %v838
        %s872 = sand.u32 %s213, 1
        %s873 = scalar_lea.sflag [#allocation3], %s872
        %s874 = sand.u32 %s213, 1
        %s875 = smul.addr %s874, 128
        %s876 = scalar_lea.vmem [#allocation2], %s875
        %s877 = sand.u32 %s239, 1
        %s878 = scalar_lea.sflag [#allocation5], %s877
        %s879 = sand.u32 %s239, 1
        %s880 = smul.addr %s879, 128
        %s881 = scalar_lea.vmem [#allocation4], %s880
        // Predicated region
        $region53: #{delayed_stack_layer0_forward.2} parent=51 // pred_check
          %p882 = pneg %p223
        $region54: #{delayed_stack_layer0_forward.2} parent=51 // pred_check_branch
          %884 = sbr.rel (%p882) target = $region56
        $region55: #{delayed_stack_layer0_forward.2} parent=51 // pred_region
          %s885 = smul.u32 16, %s27
          %887 = vsyncadd %s873, 0
          %s888 = smul.addr %s885, 8
          %s889 = scalar_lea.hbm %s8, %s888
          %s890 = sshll.u32 %s876, 4
          %s891 = int_to_ptr.vmem [resolvable:$true] %s890
          %s892 = sshll.u32 %s889, 4
          %s893 = int_to_ptr.hbm [resolvable:$true] %s892
          %898 = dma.vmem_to_hbm [thread:$0]  %s891, 2048, %s893, %s873, 128, 128, 8
        $region56: #{delayed_stack_layer0_forward.2} parent=51 // pred_fallthru
          _
        // Predicated region
        $region57: #{delayed_stack_layer0_forward.2} parent=51 // pred_check
          %p899 = pneg %p249
        $region58: #{delayed_stack_layer0_forward.2} parent=51 // pred_check_branch
          %901 = sbr.rel (%p899) target = $region60
        $region59: #{delayed_stack_layer0_forward.2} parent=51 // pred_region
          %s902 = smul.u32 16, %s27
          %904 = vsyncadd %s878, 0
          %s905 = smul.addr %s902, 8
          %s906 = scalar_lea.hbm %s9, %s905
          %s907 = sshll.u32 %s881, 4
          %s908 = int_to_ptr.vmem [resolvable:$true] %s907
          %s909 = sshll.u32 %s906, 4
          %s910 = int_to_ptr.hbm [resolvable:$true] %s909
          %915 = dma.vmem_to_hbm [thread:$0]  %s908, 2048, %s910, %s878, 128, 128, 8
        $region60: #{delayed_stack_layer0_forward.2} parent=51 // pred_fallthru
          _
      $region52: #{delayed_stack_layer0_forward.2} parent=5 // pred_fallthru
        _
      %p916 = scmp.le.s32.totalorder 2, %s22
      // Predicated region
      $region61: #{delayed_stack_layer0_forward.2} parent=5 // pred_check
        %p917 = pneg %p916
      $region62: #{delayed_stack_layer0_forward.2} parent=5 // pred_check_branch
        %919 = sbr.rel (%p917) target = $region64
      $region63: #{delayed_stack_layer0_forward.2} parent=5 // pred_region
        %s920 = ssub.s32 %s22, 2
        // Predicated region
        $region65: #{delayed_stack_layer0_forward.2} parent=63 // pred_check
          %p921 = pneg %p229
        $region66: #{delayed_stack_layer0_forward.2} parent=63 // pred_check_branch
          %923 = sbr.rel (%p921) target = $region68
        $region67: #{delayed_stack_layer0_forward.2} parent=63 // pred_region
          %s924 = sand.u32 %s214, 1
          %s925 = scalar_lea.sflag [#allocation3], %s924
          %s926 = sand.u32 %s214, 1
          %s927 = smul.addr %s926, 128
          %s928 = scalar_lea.vmem [#allocation2], %s927
          %930 = dma.done %s925, 2048
        $region68: #{delayed_stack_layer0_forward.2} parent=63 // pred_fallthru
          _
        // Predicated region
        $region69: #{delayed_stack_layer0_forward.2} parent=63 // pred_check
          %p931 = pneg %p255
        $region70: #{delayed_stack_layer0_forward.2} parent=63 // pred_check_branch
          %933 = sbr.rel (%p931) target = $region72
        $region71: #{delayed_stack_layer0_forward.2} parent=63 // pred_region
          %s934 = sand.u32 %s240, 1
          %s935 = scalar_lea.sflag [#allocation5], %s934
          %s936 = sand.u32 %s240, 1
          %s937 = smul.addr %s936, 128
          %s938 = scalar_lea.vmem [#allocation4], %s937
          %940 = dma.done %s935, 2048
        $region72: #{delayed_stack_layer0_forward.2} parent=63 // pred_fallthru
          _
      $region64: #{delayed_stack_layer0_forward.2} parent=5 // pred_fallthru
        _
    $region6: #{delayed_stack_layer0_forward.2} parent=1 // loop_footer
      %s26 = sadd.s32 1, %s22
    $region7: #{delayed_stack_layer0_forward.2} parent=1 // loop_footer_branch
      %21 = sbr.rel target = $region3
    $region8: #{delayed_stack_layer0_forward.2} parent=1 // loop_exit
      _
    %941 = vsyncpa [#allocation3], 1
    %s942 = scalar_lea.sflag [#allocation3], 1
    %943 = vsyncpa %s942, 1
    %944 = vsyncpa [#allocation5], 1
    %s945 = scalar_lea.sflag [#allocation5], 1
    %946 = vsyncpa %s945, 1

</llo_original>
